<compile_context>
chip_gen: v7x
topology: tpu7x:2x2x1
jax: 0.10.0
libtpu: 0.0.40
codegen_flags: <defaults>
</compile_context>

<pallas_src>
import functools

import jax
import jax.numpy as jnp
import numpy as np
from jax.experimental import pallas as pl
from jax.experimental.pallas import tpu as pltpu


def kl_kernel(const_ref, samples_ref, theta_ref, out_ref, *, beta, j):
    """One lane-dense batch tile.

    const_ref:   (1,) f32 in SMEM, C = sum_sites(0.5*|theta| + log(1+e^-|theta|)).
    samples_ref: (L, L, TB) int8 spins in {-1,+1}; batch on the 128-lane axis.
    theta_ref:   (L, L, 1) f32 per-site Bernoulli logits (lane-broadcast).
    out_ref:     (4, TB) f32 slab; rows = [log_prob, loss, actions, log_weight].
    """
    s = samples_ref[...].astype(jnp.float32)        # (L, L, TB); cast hides under DMA
    theta = theta_ref[...]                          # (L, L, 1) f32
    c = const_ref[0]                                # SMEM scalar

    def site_sum(x):                                # (a, b, TB) -> (1, TB)
        return jnp.sum(jnp.sum(x, axis=0), axis=0, keepdims=True)

    # --- classical FM Ising energy, periodic square lattice -----------------
    # vertical bonds: leading-axis slices (tile-aligned, full-vreg ops)
    e_v = site_sum(s[:-1] * s[1:]) + site_sum(s[-1:] * s[:1])
    # horizontal bonds: sublane-axis neighbours + periodic wrap term.
    # TODO(synk): a sublane pltpu.roll(s, 1, axis=1) would move this to the XLU
    # slot; kept as slices (known-clean lowering) since the kernel is HBM-bound.
    e_h = site_sum(s[:, :-1] * s[:, 1:]) + site_sum(s[:, -1:] * s[:, :1])
    energy = -j * (e_v + e_h)                       # (1, TB)

    # --- model.log_prob (factorized Bernoulli), transcendental-free ---------
    #   log q(s) = 0.5 * sum_sites(theta * s) - C
    log_prob = 0.5 * site_sum(theta * s) - c        # (1, TB)

    # TODO(synk): compute_energy()'s dispatch on spin_model / penalty_78 /
    # horizontal_trotter is not specified upstream; the classical FM
    # square-lattice energy is used for both `actions` and `true_exp`.
    actions = beta * energy                         # (1, TB)
    loss = log_prob + actions                       # (1, TB)
    log_weight = -actions - log_prob                # true_exp - log_prob (reuses actions)

    # single unmasked-as-possible store of the whole output slab
    out_ref[...] = jnp.concatenate([log_prob, loss, actions, log_weight], axis=0)


def kl_forward(samples, theta, *, beta, j, stabilize=True, block_b=1024,
               lane_major=False):
    """Forward pass of KullbackLeiblerLoss.

    samples: (B, L, L) spins in {-1,+1} (any real dtype), or -- if
             lane_major=True -- (L, L, B) spins (ideally already int8, which
             skips all wrapper-side layout traffic).
    theta:   (L, L) per-site Bernoulli logits of the factorized model.
    block_b: batch tile width in lanes; must be a multiple of 128.
             Tuned default 1024 (auto-clamped to the padded batch).
    Returns (loss_reinforce, loss, actions, weight_hist, log_prob_hist, samples).
    """
    assert block_b % 128 == 0, "block_b must be a multiple of 128 (lane-dense tiles)"

    # --- layout: batch on lanes, int8 spins, padded batch -------------------
    if lane_major:
        L, _, B = samples.shape
        s_llb = samples.astype(jnp.int8)            # +/-1 exact in int8
    else:
        B, L, _ = samples.shape
        # cast to int8 BEFORE the transpose: 4x less HBM traffic than f32
        s_llb = jnp.transpose(samples.astype(jnp.int8), (1, 2, 0))   # (L, L, B)

    b_pad128 = pl.cdiv(B, 128) * 128
    tb = min(int(block_b), b_pad128)                # still a multiple of 128
    n_tiles = pl.cdiv(B, tb)
    b_pad = n_tiles * tb
    if b_pad != B:
        s_llb = jnp.pad(s_llb, ((0, 0), (0, 0), (0, b_pad - B)), constant_values=1)

    theta_f = theta.astype(jnp.float32)
    theta3 = theta_f.reshape(L, L, 1)
    abs_t = jnp.abs(theta_f)
    # sample-independent part of log_prob (one tiny reduction, done once)
    const = jnp.reshape(jnp.sum(0.5 * abs_t + jax.nn.softplus(-abs_t)), (1,))

    # VMEM budget: f32 working set is ~ a few tiles; keep limit modest so the
    # same build stays inside v7x's 64 MiB physical VMEM (v5e/v6e have 128 MiB).
    tile_f32_bytes = L * L * tb * 4
    vmem_limit = int(min(64 * 1024 * 1024,
                         max(32 * 1024 * 1024, 12 * tile_f32_bytes)))

    kern = functools.partial(kl_kernel, beta=float(beta), j=float(j))
    packed = pl.pallas_call(
        kern,
        grid=(n_tiles,),
        in_specs=[
            pl.BlockSpec(memory_space=pltpu.MemorySpace.SMEM),     # C (scalar)
            pl.BlockSpec((L, L, tb), lambda i: (0, 0, i)),         # samples tile (int8)
            pl.BlockSpec((L, L, 1), lambda i: (0, 0, 0)),          # theta (resident)
        ],
        out_specs=pl.BlockSpec((4, tb), lambda i: (0, i)),
        out_shape=jax.ShapeDtypeStruct((4, b_pad), jnp.float32),
        compiler_params=pltpu.CompilerParams(
            dimension_semantics=("parallel",),
            vmem_limit_bytes=vmem_limit),
    )(const, s_llb, theta3)

    log_prob = packed[0, :B]
    loss = packed[1, :B]
    actions = packed[2, :B]
    log_weight = packed[3, :B]

    # Batch-coupled reductions stay outside the batch-tiled kernel (they need
    # the full batch): mean-centering and the importance-weight softmax.
    if stabilize:
        loss_reinforce = (loss - jnp.mean(loss)) * log_prob / 1000.0
    else:
        loss_reinforce = loss * log_prob
    weight_hist = jax.nn.softmax(log_weight)        # normalize_weights()
    log_prob_hist = log_prob
    return loss_reinforce, loss, actions, weight_hist, log_prob_hist, samples


def kl_reference(samples, theta, *, beta, j, stabilize=True):
    """Pure-JAX reference mirroring the PyTorch forward (same synthesized model)."""
    s = samples.astype(jnp.float32)                 # (B, L, L)
    t = theta.astype(jnp.float32)
    e_v = jnp.sum(s * jnp.roll(s, 1, axis=1), axis=(1, 2))
    e_h = jnp.sum(s * jnp.roll(s, 1, axis=2), axis=(1, 2))
    energy = -j * (e_v + e_h)
    log_prob = jnp.sum(jax.nn.log_sigmoid(t[None] * s), axis=(1, 2))
    actions = beta * energy
    loss = log_prob + actions
    if stabilize:
        loss_reinforce = (loss - jnp.mean(loss)) * log_prob / 1000.0
    else:
        loss_reinforce = loss * log_prob
    log_weight = -1.0 * beta * energy - log_prob
    weight_hist = jax.nn.softmax(log_weight)
    return loss_reinforce, loss, actions, weight_hist, log_prob


if __name__ == "__main__":
    B, L = 512, 16          # batch_size, lattice_size (4 lane-dense tiles at block_b=128)
    beta, j = 0.5, 1.0

    key = jax.random.PRNGKey(0)
    k_theta, k_samp = jax.random.split(key)

    # deterministic synthetic model parameters (per-site Bernoulli logits)
    theta = 0.1 * jax.random.normal(k_theta, (L, L), dtype=jnp.float32)

    # model.sample(batch_size): emit spins directly in lane-major (L, L, B)
    # int8 layout so the loss wrapper needs no XLA transpose / f32 re-stream.
    u = jax.random.uniform(k_samp, (L, L, B), dtype=jnp.float32)
    s_llb = jnp.where(u < jax.nn.sigmoid(theta)[:, :, None], 1, -1).astype(jnp.int8)

    # small block_b here just to exercise several grid steps at a tiny batch;
    # the tuned production default is block_b=1024.
    outs = kl_forward(s_llb, theta, beta=beta, j=j, stabilize=True,
                      block_b=128, lane_major=True)
    outs = jax.block_until_ready(outs)

    samples_bll = jnp.transpose(s_llb, (2, 0, 1)).astype(jnp.float32)  # (B, L, L)
    refs = kl_reference(samples_bll, theta, beta=beta, j=j, stabilize=True)
    names = ("loss_reinforce", "loss", "actions", "weight_hist", "log_prob_hist")
    for name, got, want in zip(names, outs[:5], refs):
        np.testing.assert_allclose(np.asarray(got), np.asarray(want),
                                   rtol=2e-3, atol=2e-3, err_msg=name)
    print("KERNEL_OK")
</pallas_src>

<mosaic_0001>
module attributes {stable_mosaic.version = 11 : i64} {
  func.func @kl_kernel(%arg0: i32, %arg1: memref<1xf32, #tpu.memory_space<smem>>, %arg2: memref<16x16x128xi8, #tpu.memory_space<vmem>>, %arg3: memref<16x16x1xf32, #tpu.memory_space<vmem>>, %arg4: memref<4x128xf32, #tpu.memory_space<vmem>>) attributes {dimension_semantics = [#tpu.dimension_semantics<parallel>], iteration_bounds = array<i64: 4>, scalar_prefetch = 0 : i64, scratch_operands = 0 : i64, tpu.core_type = #tpu.core_type<tc>, window_params = [{transform_indices = @transform_0, window_bounds = array<i64: 1>}, {transform_indices = @transform_1, window_bounds = array<i64: 16, 16, 128>}, {pipeline_mode = #tpu.pipeline_mode<synchronous>, transform_indices = @transform_2, window_bounds = array<i64: 16, 16, 1>}, {transform_indices = @transform_3, window_bounds = array<i64: 4, 128>}]} {
    %c0 = arith.constant 0 : index
    %c0_0 = arith.constant 0 : index
    %c0_1 = arith.constant 0 : index
    %0 = vector.load %arg2[%c0, %c0_0, %c0_1] : memref<16x16x128xi8, #tpu.memory_space<vmem>>, vector<16x16x128xi8>
    %1 = arith.sitofp %0 : vector<16x16x128xi8> to vector<16x16x128xf32>
    %c0_2 = arith.constant 0 : index
    %c0_3 = arith.constant 0 : index
    %c0_4 = arith.constant 0 : index
    %2 = vector.load %arg3[%c0_2, %c0_3, %c0_4] : memref<16x16x1xf32, #tpu.memory_space<vmem>>, vector<16x16x1xf32>
    %c0_5 = arith.constant 0 : index
    %3 = memref.load %arg1[%c0_5] : memref<1xf32, #tpu.memory_space<smem>>
    %4 = vector.extract_strided_slice %1 {offsets = [0, 0, 0], sizes = [15, 16, 128], strides = [1, 1, 1]} : vector<16x16x128xf32> to vector<15x16x128xf32>
    %5 = vector.extract_strided_slice %1 {offsets = [1, 0, 0], sizes = [15, 16, 128], strides = [1, 1, 1]} : vector<16x16x128xf32> to vector<15x16x128xf32>
    %6 = arith.mulf %4, %5 : vector<15x16x128xf32>
    %cst = arith.constant dense<0.000000e+00> : vector<16x128xf32>
    %7 = vector.multi_reduction <add>, %6, %cst [0] : vector<15x16x128xf32> to vector<16x128xf32>
    %cst_6 = arith.constant dense<0.000000e+00> : vector<128xf32>
    %8 = vector.multi_reduction <add>, %7, %cst_6 [0] : vector<16x128xf32> to vector<128xf32>
    %9 = vector.shape_cast %8 : vector<128xf32> to vector<1x128xf32>
    %10 = vector.extract_strided_slice %1 {offsets = [15, 0, 0], sizes = [1, 16, 128], strides = [1, 1, 1]} : vector<16x16x128xf32> to vector<1x16x128xf32>
    %11 = vector.extract_strided_slice %1 {offsets = [0, 0, 0], sizes = [1, 16, 128], strides = [1, 1, 1]} : vector<16x16x128xf32> to vector<1x16x128xf32>
    %12 = arith.mulf %10, %11 : vector<1x16x128xf32>
    %cst_7 = arith.constant dense<0.000000e+00> : vector<16x128xf32>
    %13 = vector.multi_reduction <add>, %12, %cst_7 [0] : vector<1x16x128xf32> to vector<16x128xf32>
    %cst_8 = arith.constant dense<0.000000e+00> : vector<128xf32>
    %14 = vector.multi_reduction <add>, %13, %cst_8 [0] : vector<16x128xf32> to vector<128xf32>
    %15 = vector.shape_cast %14 : vector<128xf32> to vector<1x128xf32>
    %16 = arith.addf %9, %15 : vector<1x128xf32>
    %17 = vector.extract_strided_slice %1 {offsets = [0, 0, 0], sizes = [16, 15, 128], strides = [1, 1, 1]} : vector<16x16x128xf32> to vector<16x15x128xf32>
    %18 = vector.extract_strided_slice %1 {offsets = [0, 1, 0], sizes = [16, 15, 128], strides = [1, 1, 1]} : vector<16x16x128xf32> to vector<16x15x128xf32>
    %19 = arith.mulf %17, %18 : vector<16x15x128xf32>
    %cst_9 = arith.constant dense<0.000000e+00> : vector<15x128xf32>
    %20 = vector.multi_reduction <add>, %19, %cst_9 [0] : vector<16x15x128xf32> to vector<15x128xf32>
    %cst_10 = arith.constant dense<0.000000e+00> : vector<128xf32>
    %21 = vector.multi_reduction <add>, %20, %cst_10 [0] : vector<15x128xf32> to vector<128xf32>
    %22 = vector.shape_cast %21 : vector<128xf32> to vector<1x128xf32>
    %23 = vector.extract_strided_slice %1 {offsets = [0, 15, 0], sizes = [16, 1, 128], strides = [1, 1, 1]} : vector<16x16x128xf32> to vector<16x1x128xf32>
    %24 = vector.extract_strided_slice %1 {offsets = [0, 0, 0], sizes = [16, 1, 128], strides = [1, 1, 1]} : vector<16x16x128xf32> to vector<16x1x128xf32>
    %25 = arith.mulf %23, %24 : vector<16x1x128xf32>
    %cst_11 = arith.constant dense<0.000000e+00> : vector<1x128xf32>
    %26 = vector.multi_reduction <add>, %25, %cst_11 [0] : vector<16x1x128xf32> to vector<1x128xf32>
    %cst_12 = arith.constant dense<0.000000e+00> : vector<128xf32>
    %27 = vector.multi_reduction <add>, %26, %cst_12 [0] : vector<1x128xf32> to vector<128xf32>
    %28 = vector.shape_cast %27 : vector<128xf32> to vector<1x128xf32>
    %29 = arith.addf %22, %28 : vector<1x128xf32>
    %30 = arith.addf %16, %29 : vector<1x128xf32>
    %cst_13 = arith.constant -1.000000e+00 : f32
    %31 = vector.broadcast %cst_13 : f32 to vector<1x128xf32>
    %32 = arith.mulf %31, %30 : vector<1x128xf32>
    %33 = vector.broadcast %2 : vector<16x16x1xf32> to vector<16x16x128xf32>
    %34 = arith.mulf %33, %1 : vector<16x16x128xf32>
    %cst_14 = arith.constant dense<0.000000e+00> : vector<16x128xf32>
    %35 = vector.multi_reduction <add>, %34, %cst_14 [0] : vector<16x16x128xf32> to vector<16x128xf32>
    %cst_15 = arith.constant dense<0.000000e+00> : vector<128xf32>
    %36 = vector.multi_reduction <add>, %35, %cst_15 [0] : vector<16x128xf32> to vector<128xf32>
    %37 = vector.shape_cast %36 : vector<128xf32> to vector<1x128xf32>
    %cst_16 = arith.constant 5.000000e-01 : f32
    %38 = vector.broadcast %cst_16 : f32 to vector<1x128xf32>
    %39 = arith.mulf %38, %37 : vector<1x128xf32>
    %40 = vector.broadcast %3 : f32 to vector<1x128xf32>
    %41 = arith.subf %39, %40 : vector<1x128xf32>
    %cst_17 = arith.constant 5.000000e-01 : f32
    %42 = vector.broadcast %cst_17 : f32 to vector<1x128xf32>
    %43 = arith.mulf %42, %32 : vector<1x128xf32>
    %44 = arith.addf %41, %43 : vector<1x128xf32>
    %cst_18 = arith.constant 0.000000e+00 : f32
    %45 = vector.broadcast %cst_18 : f32 to vector<1x128xf32>
    %46 = arith.subf %45, %43 : vector<1x128xf32>
    %47 = arith.subf %46, %41 : vector<1x128xf32>
    %48 = tpu.concatenate %41, %44, %43, %47 in 0 : vector<1x128xf32>, vector<1x128xf32>, vector<1x128xf32>, vector<1x128xf32> -> vector<4x128xf32>
    %c0_19 = arith.constant 0 : index
    %c0_20 = arith.constant 0 : index
    %49 = vector.load %arg4[%c0_19, %c0_20] : memref<4x128xf32, #tpu.memory_space<vmem>>, vector<4x128xf32>
    tpu.vector_store %arg4[%c0_19, %c0_20], %48 {strides = array<i32>} : memref<4x128xf32, #tpu.memory_space<vmem>>, vector<4x128xf32>,
    return
  }
  func.func @transform_0(%arg0: i32) -> i32 {
    %c0_i32 = arith.constant 0 : i32
    %c0_i32_0 = arith.constant 0 : i32
    return %c0_i32 : i32
  }
  func.func @transform_1(%arg0: i32) -> (i32, i32, i32) {
    %c0_i32 = arith.constant 0 : i32
    %c0_i32_0 = arith.constant 0 : i32
    %c0_i32_1 = arith.constant 0 : i32
    return %c0_i32, %c0_i32_0, %arg0 : i32, i32, i32
  }
  func.func @transform_2(%arg0: i32) -> (i32, i32, i32) {
    %c0_i32 = arith.constant 0 : i32
    %c0_i32_0 = arith.constant 0 : i32
    %c0_i32_1 = arith.constant 0 : i32
    %c0_i32_2 = arith.constant 0 : i32
    return %c0_i32, %c0_i32_0, %c0_i32_1 : i32, i32, i32
  }
  func.func @transform_3(%arg0: i32) -> (i32, i32) {
    %c0_i32 = arith.constant 0 : i32
    %c0_i32_0 = arith.constant 0 : i32
    return %c0_i32, %arg0 : i32, i32
  }
}

</mosaic_0001>

<llo_original>
// kernel: tpu_custom_call.1
$region0: #{tpu_custom_call.1}
  #allocation0 [shape = 'u32[]', space=smem, size = 0x4, offset = 0x4, fixed_abs, tag = 'smem constant byte address 0x4 - core index']
  #allocation1 [shape = 'u32[144,128]{1,0:T(1,128)}', space=vmem, size = 0x12000, scoped, tag = 'internal scratch']
  #allocation2 [shape = 'f32[1]{0:T(128)S(6)}', space=smem, size = 0x200, scoped, tag = 'scoped memory for tpu_custom_call.1']
  %s0 = inlined_call_operand.<no memory space> [shape: f32[1], index: 0, kind: input, shape index: {}]
  %s1 = inlined_call_operand.vmem [shape: s8[16,16,512], index: 1, kind: input, shape index: {}]
  %s2 = inlined_call_operand.vmem [shape: f32[16,16,1], index: 2, kind: input, shape index: {}]
  %s3 = inlined_call_operand.hbm [shape: f32[4,512], index: 3, kind: output, shape index: {}]
  %s4 = sld [smem:[#allocation0]]
  $region86: #{tpu_custom_call.1} parent=0
    _
  %s6 = ssub.s32 1, %s4
  %s7 = scalar_select 0, %s6, %s4
  %8 = sst [smem:[#allocation2]] %s0
  $region1: #{tpu_custom_call.1} parent=0
    #allocation3 [shape = 'u8[65536]{0}', space=vmem, size = 0x10000, scoped, tag = 'input window, operand 1']
    #allocation4 [shape = 'u8[4096]{0}', space=vmem, size = 0x1000, scoped, tag = 'output window, operand 0']
    #allocation5 [shape = 's32[2]{0}', space=sflag, size = 0x8, scoped, tag = 'scoped memory for tpu_custom_call.1']
    %9 = vsyncpa [#allocation5], 0
    %s10 = scalar_lea.sflag [#allocation5], 1
    %11 = vsyncpa %s10, 0
    loop: start=0, step=1, limit=6
    $region2: #{tpu_custom_call.1} parent=1 // loop_pre_header
      _
    $region3: #{tpu_custom_call.1} parent=1 // loop_header
      %s13 = sphi 0, %s17
      %p14 = scmp.ge.s32.totalorder %s13, 6
      %s21 = sphi 0, %s21
      %s23 = sphi 0, %s21
      %s24 = sphi 0, %s23
      %s38 = sphi 0, %s24
      %s44 = sphi 0, %s46
      %s47 = sphi 0, %s44
      %s48 = sphi 0, %s47
      %s64 = sphi 0, %s48
      %s68 = sphi 0, %s68
      %s70 = sphi 0, %s68
      %s71 = sphi 0, %s70
      %s85 = sphi 0, %s71
      %s91 = sphi 0, %s93
      %s94 = sphi 0, %s91
      %s95 = sphi 0, %s94
      %s111 = sphi 0, %s95
    $region4: #{tpu_custom_call.1} parent=1 // loop_header_branch
      %16 = sbr.rel (%p14) target = $region8
    $region5: #{tpu_custom_call.1} parent=1 // loop_body
      %s18 = ssub.s32 %s13, 1
      %s19 = ssub.s32 %s13, 2
      %s20 = sadd.s32 %s13, 1
      %s22 = sadd.s32 %s21, 1
      %p25 = scmp.eq.s32.totalorder %s13, 3
      %p26 = scmp.ne.s32.totalorder %s21, %s23
      %p27 = scmp.eq.s32.totalorder %s13, 0
      %p28 = por %p26, %p27
      %p29 = scmp.ne.s32.totalorder %s21, %s23
      %p30 = scmp.eq.s32.totalorder %s18, 3
      %p31 = por %p29, %p30
      %p32 = scmp.ne.s32.totalorder %s23, %s24
      %p33 = scmp.eq.s32.totalorder %s18, 0
      %p34 = por %p32, %p33
      %p35 = scmp.ne.s32.totalorder %s23, %s24
      %p36 = scmp.eq.s32.totalorder %s19, 3
      %p37 = por %p35, %p36
      %p39 = scmp.ne.s32.totalorder %s24, %s38
      %p40 = scmp.eq.s32.totalorder %s19, 0
      %p41 = por %p39, %p40
      %s42 = ssub.s32 %s13, %s20
      %p43 = scmp.eq.s32.totalorder %s42, 0
      %s45 = sadd.s32 %s44, 1
      %s46 = scalar_select %p43, %s44, %s45
      %p49 = pneg %p43
      %p50 = scmp.eq.s32.totalorder %s13, 3
      %p51 = por %p49, %p50
      %p52 = scmp.ne.s32.totalorder %s44, %s47
      %p53 = scmp.eq.s32.totalorder %s13, 0
      %p54 = por %p52, %p53
      %p55 = scmp.ne.s32.totalorder %s44, %s47
      %p56 = scmp.eq.s32.totalorder %s18, 3
      %p57 = por %p55, %p56
      %p58 = scmp.ne.s32.totalorder %s47, %s48
      %p59 = scmp.eq.s32.totalorder %s18, 0
      %p60 = por %p58, %p59
      %p61 = scmp.ne.s32.totalorder %s47, %s48
      %p62 = scmp.eq.s32.totalorder %s19, 3
      %p63 = por %p61, %p62
      %p65 = scmp.ne.s32.totalorder %s48, %s64
      %p66 = scmp.eq.s32.totalorder %s19, 0
      %p67 = por %p65, %p66
      %s69 = sadd.s32 %s68, 1
      %p72 = scmp.eq.s32.totalorder %s13, 3
      %p73 = scmp.ne.s32.totalorder %s68, %s70
      %p74 = scmp.eq.s32.totalorder %s13, 0
      %p75 = por %p73, %p74
      %p76 = scmp.ne.s32.totalorder %s68, %s70
      %p77 = scmp.eq.s32.totalorder %s18, 3
      %p78 = por %p76, %p77
      %p79 = scmp.ne.s32.totalorder %s70, %s71
      %p80 = scmp.eq.s32.totalorder %s18, 0
      %p81 = por %p79, %p80
      %p82 = scmp.ne.s32.totalorder %s70, %s71
      %p83 = scmp.eq.s32.totalorder %s19, 3
      %p84 = por %p82, %p83
      %p86 = scmp.ne.s32.totalorder %s71, %s85
      %p87 = scmp.eq.s32.totalorder %s19, 0
      %p88 = por %p86, %p87
      %s89 = ssub.s32 %s13, %s20
      %p90 = scmp.eq.s32.totalorder %s89, 0
      %s92 = sadd.s32 %s91, 1
      %s93 = scalar_select %p90, %s91, %s92
      %p96 = pneg %p90
      %p97 = scmp.eq.s32.totalorder %s13, 3
      %p98 = por %p96, %p97
      %p99 = scmp.ne.s32.totalorder %s91, %s94
      %p100 = scmp.eq.s32.totalorder %s13, 0
      %p101 = por %p99, %p100
      %p102 = scmp.ne.s32.totalorder %s91, %s94
      %p103 = scmp.eq.s32.totalorder %s18, 3
      %p104 = por %p102, %p103
      %p105 = scmp.ne.s32.totalorder %s94, %s95
      %p106 = scmp.eq.s32.totalorder %s18, 0
      %p107 = por %p105, %p106
      %p108 = scmp.ne.s32.totalorder %s94, %s95
      %p109 = scmp.eq.s32.totalorder %s19, 3
      %p110 = por %p108, %p109
      %p112 = scmp.ne.s32.totalorder %s95, %s111
      %p113 = scmp.eq.s32.totalorder %s19, 0
      %p114 = por %p112, %p113
      %p115 = scmp.le.s32.totalorder 1, %s13
      %p116 = scmp.lt.s32.totalorder %s13, 5
      %p117 = pnand %p115, %p116
      %p118 = pneg %p117
      // Predicated region
      $region9: #{tpu_custom_call.1} parent=5 // pred_check
        _
      $region10: #{tpu_custom_call.1} parent=5 // pred_check_branch
        %120 = sbr.rel (%p117) target = $region12
      $region11: #{tpu_custom_call.1} parent=5 // pred_region
        %s121 = ssub.s32 %s13, 1
        // Predicated region
        $region13: #{tpu_custom_call.1} parent=11 // pred_check
          %p122 = pneg %p34
        $region14: #{tpu_custom_call.1} parent=11 // pred_check_branch
          %124 = sbr.rel (%p122) target = $region16
        $region15: #{tpu_custom_call.1} parent=11 // pred_region
          _
        $region16: #{tpu_custom_call.1} parent=11 // pred_fallthru
          _
        // Predicated region
        $region17: #{tpu_custom_call.1} parent=11 // pred_check
          %p125 = pneg %p81
        $region18: #{tpu_custom_call.1} parent=11 // pred_check_branch
          %127 = sbr.rel (%p125) target = $region20
        $region19: #{tpu_custom_call.1} parent=11 // pred_region
          _
        $region20: #{tpu_custom_call.1} parent=11 // pred_fallthru
          _
      $region12: #{tpu_custom_call.1} parent=5 // pred_fallthru
        _
      %p128 = scmp.lt.s32.totalorder %s13, 4
      // Predicated region
      $region21: #{tpu_custom_call.1} parent=5 // pred_check
        %p129 = pneg %p128
      $region22: #{tpu_custom_call.1} parent=5 // pred_check_branch
        %131 = sbr.rel (%p129) target = $region24
      $region23: #{tpu_custom_call.1} parent=5 // pred_region
        // Predicated region
        $region25: #{tpu_custom_call.1} parent=23 // pred_check
          %p132 = pneg %p54
        $region26: #{tpu_custom_call.1} parent=23 // pred_check_branch
          %134 = sbr.rel (%p132) target = $region28
        $region27: #{tpu_custom_call.1} parent=23 // pred_region
          %s135 = sand.u32 %s44, 1
          %s136 = sand.u32 %s44, 1
          %s137 = smul.addr %s136, 64
          %s138 = scalar_lea.vmem [#allocation3], %s137
          %s139 = smul.addr %s13, 2
          %s140 = scalar_lea.vmem %s1, %s139
          // Predicated region
          $region29: #{tpu_custom_call.1} parent=27 // pred_check
            _
          $region30: #{tpu_custom_call.1} parent=27 // pred_check_branch
            %142 = sbr.rel (0) target = $region32
          $region31: #{tpu_custom_call.1} parent=27 // pred_region
            // Predicated region
            $region33: #{tpu_custom_call.1} parent=31 // pred_check
              _
            $region34: #{tpu_custom_call.1} parent=31 // pred_check_branch
              %144 = sbr.rel target = $region36
            $region35: #{tpu_custom_call.1} parent=31 // pred_region
              // Predicated region
              $region48: #{tpu_custom_call.1} parent=35 // pred_check
                _
              $region49: #{tpu_custom_call.1} parent=35 // pred_check_branch
                %221 = sbr.rel (0) target = $region51
              $region50: #{tpu_custom_call.1} parent=35 // pred_region
                loop: start=0, step=1, limit=1
                $region52: #{tpu_custom_call.1} parent=50 // loop_pre_header
                  _
                $region53: #{tpu_custom_call.1} parent=50 // loop_header
                  %s223 = sphi 0, %s227
                  %p224 = scmp.ge.s32.totalorder %s223, 1
                  %s228 = sphi %s140, %s140
                  %s229 = sphi %s138, %s138
                $region54: #{tpu_custom_call.1} parent=50 // loop_header_branch
                  %226 = sbr.rel (%p224) target = $region58
                $region55: #{tpu_custom_call.1} parent=50 // loop_body
                  _
                $region56: #{tpu_custom_call.1} parent=50 // loop_footer
                  %s227 = sadd.s32 1, %s223
                $region57: #{tpu_custom_call.1} parent=50 // loop_footer_branch
                  %222 = sbr.rel target = $region53
                $region58: #{tpu_custom_call.1} parent=50 // loop_exit
                  _
                loop: start=0, step=1, limit=1
                $region59: #{tpu_custom_call.1} parent=50 // loop_pre_header
                  _
                $region60: #{tpu_custom_call.1} parent=50 // loop_header
                  %s232 = sphi 0, %s236
                  %p233 = scmp.ge.s32.totalorder %s232, 1
                  %s237 = sphi %s140, %s140
                  %s238 = sphi %s138, %s138
                $region61: #{tpu_custom_call.1} parent=50 // loop_header_branch
                  %235 = sbr.rel (%p233) target = $region65
                $region62: #{tpu_custom_call.1} parent=50 // loop_body
                  %v239 = vld [vmem:[%s237] sm:$0x3]
                  %240 = vst [vmem:[%s238] sm:$0x3] %v239
                  %v241 = vld [vmem:[%s237 + $0x8] sm:$0x3]
                  %242 = vst [vmem:[%s238 + $0x2] sm:$0x3] %v241
                  %v243 = vld [vmem:[%s237 + $0x10] sm:$0x3]
                  %244 = vst [vmem:[%s238 + $0x4] sm:$0x3] %v243
                  %v245 = vld [vmem:[%s237 + $0x18] sm:$0x3]
                  %246 = vst [vmem:[%s238 + $0x6] sm:$0x3] %v245
                  %v247 = vld [vmem:[%s237 + $0x20] sm:$0x3]
                  %248 = vst [vmem:[%s238 + $0x8] sm:$0x3] %v247
                  %v249 = vld [vmem:[%s237 + $0x28] sm:$0x3]
                  %250 = vst [vmem:[%s238 + $0xa] sm:$0x3] %v249
                  %v251 = vld [vmem:[%s237 + $0x30] sm:$0x3]
                  %252 = vst [vmem:[%s238 + $0xc] sm:$0x3] %v251
                  %v253 = vld [vmem:[%s237 + $0x38] sm:$0x3]
                  %254 = vst [vmem:[%s238 + $0xe] sm:$0x3] %v253
                  %v255 = vld [vmem:[%s237 + $0x40] sm:$0x3]
                  %256 = vst [vmem:[%s238 + $0x10] sm:$0x3] %v255
                  %v257 = vld [vmem:[%s237 + $0x48] sm:$0x3]
                  %258 = vst [vmem:[%s238 + $0x12] sm:$0x3] %v257
                  %v259 = vld [vmem:[%s237 + $0x50] sm:$0x3]
                  %260 = vst [vmem:[%s238 + $0x14] sm:$0x3] %v259
                  %v261 = vld [vmem:[%s237 + $0x58] sm:$0x3]
                  %262 = vst [vmem:[%s238 + $0x16] sm:$0x3] %v261
                  %v263 = vld [vmem:[%s237 + $0x60] sm:$0x3]
                  %264 = vst [vmem:[%s238 + $0x18] sm:$0x3] %v263
                  %v265 = vld [vmem:[%s237 + $0x68] sm:$0x3]
                  %266 = vst [vmem:[%s238 + $0x1a] sm:$0x3] %v265
                  %v267 = vld [vmem:[%s237 + $0x70] sm:$0x3]
                  %268 = vst [vmem:[%s238 + $0x1c] sm:$0x3] %v267
                  %v269 = vld [vmem:[%s237 + $0x78] sm:$0x3]
                  %270 = vst [vmem:[%s238 + $0x1e] sm:$0x3] %v269
                  %v271 = vld [vmem:[%s237 + $0x80] sm:$0x3]
                  %272 = vst [vmem:[%s238 + $0x20] sm:$0x3] %v271
                  %v273 = vld [vmem:[%s237 + $0x88] sm:$0x3]
                  %274 = vst [vmem:[%s238 + $0x22] sm:$0x3] %v273
                  %v275 = vld [vmem:[%s237 + $0x90] sm:$0x3]
                  %276 = vst [vmem:[%s238 + $0x24] sm:$0x3] %v275
                  %v277 = vld [vmem:[%s237 + $0x98] sm:$0x3]
                  %278 = vst [vmem:[%s238 + $0x26] sm:$0x3] %v277
                  %v279 = vld [vmem:[%s237 + $0xa0] sm:$0x3]
                  %280 = vst [vmem:[%s238 + $0x28] sm:$0x3] %v279
                  %v281 = vld [vmem:[%s237 + $0xa8] sm:$0x3]
                  %282 = vst [vmem:[%s238 + $0x2a] sm:$0x3] %v281
                  %v283 = vld [vmem:[%s237 + $0xb0] sm:$0x3]
                  %284 = vst [vmem:[%s238 + $0x2c] sm:$0x3] %v283
                  %v285 = vld [vmem:[%s237 + $0xb8] sm:$0x3]
                  %286 = vst [vmem:[%s238 + $0x2e] sm:$0x3] %v285
                  %v287 = vld [vmem:[%s237 + $0xc0] sm:$0x3]
                  %288 = vst [vmem:[%s238 + $0x30] sm:$0x3] %v287
                  %v289 = vld [vmem:[%s237 + $0xc8] sm:$0x3]
                  %290 = vst [vmem:[%s238 + $0x32] sm:$0x3] %v289
                  %v291 = vld [vmem:[%s237 + $0xd0] sm:$0x3]
                  %292 = vst [vmem:[%s238 + $0x34] sm:$0x3] %v291
                  %v293 = vld [vmem:[%s237 + $0xd8] sm:$0x3]
                  %294 = vst [vmem:[%s238 + $0x36] sm:$0x3] %v293
                  %v295 = vld [vmem:[%s237 + $0xe0] sm:$0x3]
                  %296 = vst [vmem:[%s238 + $0x38] sm:$0x3] %v295
                  %v297 = vld [vmem:[%s237 + $0xe8] sm:$0x3]
                  %298 = vst [vmem:[%s238 + $0x3a] sm:$0x3] %v297
                  %v299 = vld [vmem:[%s237 + $0xf0] sm:$0x3]
                  %300 = vst [vmem:[%s238 + $0x3c] sm:$0x3] %v299
                  %v301 = vld [vmem:[%s237 + $0xf8] sm:$0x3]
                  %302 = vst [vmem:[%s238 + $0x3e] sm:$0x3] %v301
                $region63: #{tpu_custom_call.1} parent=50 // loop_footer
                  %s236 = sadd.s32 1, %s232
                $region64: #{tpu_custom_call.1} parent=50 // loop_footer_branch
                  %231 = sbr.rel target = $region60
                $region65: #{tpu_custom_call.1} parent=50 // loop_exit
                  _
              $region51: #{tpu_custom_call.1} parent=35 // pred_fallthru
                _
            $region36: #{tpu_custom_call.1} parent=31 // pred_fallthru
              _
            // Predicated region
            $region37: #{tpu_custom_call.1} parent=31 // pred_check
              _
            $region38: #{tpu_custom_call.1} parent=31 // pred_check_branch
              %146 = sbr.rel (0) target = $region40
            $region39: #{tpu_custom_call.1} parent=31 // pred_region
              loop: start=0, step=1, limit=1
              $region41: #{tpu_custom_call.1} parent=39 // loop_pre_header
                _
              $region42: #{tpu_custom_call.1} parent=39 // loop_header
                %s149 = sphi 0, %s153
                %p150 = scmp.ge.s32.totalorder %s149, 1
                %s154 = sphi %s140, %s140
                %s155 = sphi %s138, %s138
              $region43: #{tpu_custom_call.1} parent=39 // loop_header_branch
                %152 = sbr.rel (%p150) target = $region47
              $region44: #{tpu_custom_call.1} parent=39 // loop_body
                %v156 = vld [vmem:[%s154] sm:$0x3]
                %157 = vst [vmem:[%s155] sm:$0x3] %v156
                %v158 = vld [vmem:[%s154 + $0x8] sm:$0x3]
                %159 = vst [vmem:[%s155 + $0x2] sm:$0x3] %v158
                %v160 = vld [vmem:[%s154 + $0x10] sm:$0x3]
                %161 = vst [vmem:[%s155 + $0x4] sm:$0x3] %v160
                %v162 = vld [vmem:[%s154 + $0x18] sm:$0x3]
                %163 = vst [vmem:[%s155 + $0x6] sm:$0x3] %v162
                %v164 = vld [vmem:[%s154 + $0x20] sm:$0x3]
                %165 = vst [vmem:[%s155 + $0x8] sm:$0x3] %v164
                %v166 = vld [vmem:[%s154 + $0x28] sm:$0x3]
                %167 = vst [vmem:[%s155 + $0xa] sm:$0x3] %v166
                %v168 = vld [vmem:[%s154 + $0x30] sm:$0x3]
                %169 = vst [vmem:[%s155 + $0xc] sm:$0x3] %v168
                %v170 = vld [vmem:[%s154 + $0x38] sm:$0x3]
                %171 = vst [vmem:[%s155 + $0xe] sm:$0x3] %v170
                %v172 = vld [vmem:[%s154 + $0x40] sm:$0x3]
                %173 = vst [vmem:[%s155 + $0x10] sm:$0x3] %v172
                %v174 = vld [vmem:[%s154 + $0x48] sm:$0x3]
                %175 = vst [vmem:[%s155 + $0x12] sm:$0x3] %v174
                %v176 = vld [vmem:[%s154 + $0x50] sm:$0x3]
                %177 = vst [vmem:[%s155 + $0x14] sm:$0x3] %v176
                %v178 = vld [vmem:[%s154 + $0x58] sm:$0x3]
                %179 = vst [vmem:[%s155 + $0x16] sm:$0x3] %v178
                %v180 = vld [vmem:[%s154 + $0x60] sm:$0x3]
                %181 = vst [vmem:[%s155 + $0x18] sm:$0x3] %v180
                %v182 = vld [vmem:[%s154 + $0x68] sm:$0x3]
                %183 = vst [vmem:[%s155 + $0x1a] sm:$0x3] %v182
                %v184 = vld [vmem:[%s154 + $0x70] sm:$0x3]
                %185 = vst [vmem:[%s155 + $0x1c] sm:$0x3] %v184
                %v186 = vld [vmem:[%s154 + $0x78] sm:$0x3]
                %187 = vst [vmem:[%s155 + $0x1e] sm:$0x3] %v186
                %v188 = vld [vmem:[%s154 + $0x80] sm:$0x3]
                %189 = vst [vmem:[%s155 + $0x20] sm:$0x3] %v188
                %v190 = vld [vmem:[%s154 + $0x88] sm:$0x3]
                %191 = vst [vmem:[%s155 + $0x22] sm:$0x3] %v190
                %v192 = vld [vmem:[%s154 + $0x90] sm:$0x3]
                %193 = vst [vmem:[%s155 + $0x24] sm:$0x3] %v192
                %v194 = vld [vmem:[%s154 + $0x98] sm:$0x3]
                %195 = vst [vmem:[%s155 + $0x26] sm:$0x3] %v194
                %v196 = vld [vmem:[%s154 + $0xa0] sm:$0x3]
                %197 = vst [vmem:[%s155 + $0x28] sm:$0x3] %v196
                %v198 = vld [vmem:[%s154 + $0xa8] sm:$0x3]
                %199 = vst [vmem:[%s155 + $0x2a] sm:$0x3] %v198
                %v200 = vld [vmem:[%s154 + $0xb0] sm:$0x3]
                %201 = vst [vmem:[%s155 + $0x2c] sm:$0x3] %v200
                %v202 = vld [vmem:[%s154 + $0xb8] sm:$0x3]
                %203 = vst [vmem:[%s155 + $0x2e] sm:$0x3] %v202
                %v204 = vld [vmem:[%s154 + $0xc0] sm:$0x3]
                %205 = vst [vmem:[%s155 + $0x30] sm:$0x3] %v204
                %v206 = vld [vmem:[%s154 + $0xc8] sm:$0x3]
                %207 = vst [vmem:[%s155 + $0x32] sm:$0x3] %v206
                %v208 = vld [vmem:[%s154 + $0xd0] sm:$0x3]
                %209 = vst [vmem:[%s155 + $0x34] sm:$0x3] %v208
                %v210 = vld [vmem:[%s154 + $0xd8] sm:$0x3]
                %211 = vst [vmem:[%s155 + $0x36] sm:$0x3] %v210
                %v212 = vld [vmem:[%s154 + $0xe0] sm:$0x3]
                %213 = vst [vmem:[%s155 + $0x38] sm:$0x3] %v212
                %v214 = vld [vmem:[%s154 + $0xe8] sm:$0x3]
                %215 = vst [vmem:[%s155 + $0x3a] sm:$0x3] %v214
                %v216 = vld [vmem:[%s154 + $0xf0] sm:$0x3]
                %217 = vst [vmem:[%s155 + $0x3c] sm:$0x3] %v216
                %v218 = vld [vmem:[%s154 + $0xf8] sm:$0x3]
                %219 = vst [vmem:[%s155 + $0x3e] sm:$0x3] %v218
              $region45: #{tpu_custom_call.1} parent=39 // loop_footer
                %s153 = sadd.s32 1, %s149
              $region46: #{tpu_custom_call.1} parent=39 // loop_footer_branch
                %148 = sbr.rel target = $region42
              $region47: #{tpu_custom_call.1} parent=39 // loop_exit
                _
            $region40: #{tpu_custom_call.1} parent=31 // pred_fallthru
              _
          $region32: #{tpu_custom_call.1} parent=27 // pred_fallthru
            _
          %303 = vnop
        $region28: #{tpu_custom_call.1} parent=23 // pred_fallthru
          _
      $region24: #{tpu_custom_call.1} parent=5 // pred_fallthru
        _
      %p304 = scmp.le.s32.totalorder 1, %s13
      %p305 = scmp.lt.s32.totalorder %s13, 5
      %p306 = pnand %p304, %p305
      %p307 = pneg %p306
      // Predicated region
      $region66: #{tpu_custom_call.1} parent=5 // pred_check
        _
      $region67: #{tpu_custom_call.1} parent=5 // pred_check_branch
        %309 = sbr.rel (%p306) target = $region69
      $region68: #{tpu_custom_call.1} parent=5 // pred_region
        %s310 = ssub.s32 %s13, 1
        %s311 = sand.u32 %s47, 1
        %s312 = sand.u32 %s47, 1
        %s313 = smul.addr %s312, 64
        %s314 = scalar_lea.vmem [#allocation3], %s313
        // Predicated region
        $region70: #{tpu_custom_call.1} parent=68 // pred_check
          %p315 = pneg %p60
        $region71: #{tpu_custom_call.1} parent=68 // pred_check_branch
          %317 = sbr.rel (%p315) target = $region73
        $region72: #{tpu_custom_call.1} parent=68 // pred_region
          _
        $region73: #{tpu_custom_call.1} parent=68 // pred_fallthru
          _
        %p318 = pneg %p34
        %p319 = pneg %p31
        %s320 = sand.u32 %s47, 1
        %s321 = sand.u32 %s47, 1
        %s322 = smul.addr %s321, 64
        %s323 = scalar_lea.vmem [#allocation3], %s322
        %p324 = pneg %p60
        %p325 = pneg %p57
        %p326 = pneg %p81
        %p327 = pneg %p78
        %p328 = pneg %p107
        %p329 = pneg %p104
        %s330 = sand.u32 %s94, 1
        %s331 = scalar_lea.sflag [#allocation5], %s330
        %s332 = sand.u32 %s94, 1
        %s333 = smul.addr %s332, 4
        %s334 = scalar_lea.vmem [#allocation4], %s333
        %v335 = vld [vmem:[%s314] sm:$0x3]
        %v336 = vld [vmem:[%s314 + $0x2] sm:$0x3]
        %v337 = vld [vmem:[%s314 + $0x4] sm:$0x3]
        %v338 = vld [vmem:[%s314 + $0x6] sm:$0x3]
        %v339 = vld [vmem:[%s314 + $0x8] sm:$0x3]
        %v340 = vld [vmem:[%s314 + $0xa] sm:$0x3]
        %v341 = vld [vmem:[%s314 + $0xc] sm:$0x3]
        %v342 = vld [vmem:[%s314 + $0xe] sm:$0x3]
        %v343 = vld [vmem:[%s314 + $0x10] sm:$0x3]
        %v344 = vld [vmem:[%s314 + $0x12] sm:$0x3]
        %v345 = vld [vmem:[%s314 + $0x14] sm:$0x3]
        %v346 = vld [vmem:[%s314 + $0x16] sm:$0x3]
        %v347 = vld [vmem:[%s314 + $0x18] sm:$0x3]
        %v348 = vld [vmem:[%s314 + $0x1a] sm:$0x3]
        %v349 = vld [vmem:[%s314 + $0x1c] sm:$0x3]
        %v350 = vld [vmem:[%s314 + $0x1e] sm:$0x3]
        %v351 = vld [vmem:[%s314 + $0x20] sm:$0x3]
        %v352 = vld [vmem:[%s314 + $0x22] sm:$0x3]
        %v353 = vld [vmem:[%s314 + $0x24] sm:$0x3]
        %v354 = vld [vmem:[%s314 + $0x26] sm:$0x3]
        %v355 = vld [vmem:[%s314 + $0x28] sm:$0x3]
        %v356 = vld [vmem:[%s314 + $0x2a] sm:$0x3]
        %v357 = vld [vmem:[%s314 + $0x2c] sm:$0x3]
        %v358 = vld [vmem:[%s314 + $0x2e] sm:$0x3]
        %v359 = vld [vmem:[%s314 + $0x30] sm:$0x3]
        %v360 = vld [vmem:[%s314 + $0x32] sm:$0x3]
        %v361 = vld [vmem:[%s314 + $0x34] sm:$0x3]
        %v362 = vld [vmem:[%s314 + $0x36] sm:$0x3]
        %v363 = vld [vmem:[%s314 + $0x38] sm:$0x3]
        %v364 = vld [vmem:[%s314 + $0x3a] sm:$0x3]
        %v365 = vld [vmem:[%s314 + $0x3c] sm:$0x3]
        %v366 = vld [vmem:[%s314 + $0x3e] sm:$0x3]
        %v367 = vunpack.c.0.s8 %v335
        %v368 = vunpack.c.0.s8 %v336
        %v369 = vunpack.c.0.s8 %v337
        %v370 = vunpack.c.0.s8 %v338
        %v371 = vunpack.c.0.s8 %v339
        %v372 = vunpack.c.0.s8 %v340
        %v373 = vunpack.c.0.s8 %v341
        %v374 = vunpack.c.0.s8 %v342
        %v375 = vunpack.c.0.s8 %v343
        %v376 = vunpack.c.0.s8 %v344
        %v377 = vunpack.c.0.s8 %v345
        %v378 = vunpack.c.0.s8 %v346
        %v379 = vunpack.c.0.s8 %v347
        %v380 = vunpack.c.0.s8 %v348
        %v381 = vunpack.c.0.s8 %v349
        %v382 = vunpack.c.0.s8 %v350
        %v383 = vunpack.c.0.s8 %v351
        %v384 = vunpack.c.0.s8 %v352
        %v385 = vunpack.c.0.s8 %v353
        %v386 = vunpack.c.0.s8 %v354
        %v387 = vunpack.c.0.s8 %v355
        %v388 = vunpack.c.0.s8 %v356
        %v389 = vunpack.c.0.s8 %v357
        %v390 = vunpack.c.0.s8 %v358
        %v391 = vunpack.c.0.s8 %v359
        %v392 = vunpack.c.0.s8 %v360
        %v393 = vunpack.c.0.s8 %v361
        %v394 = vunpack.c.0.s8 %v362
        %v395 = vunpack.c.0.s8 %v363
        %v396 = vunpack.c.0.s8 %v364
        %v397 = vunpack.c.0.s8 %v365
        %v398 = vunpack.c.0.s8 %v366
        %v399 = vcvt.s32.f32 %v367
        %v400 = vcvt.s32.f32 %v368
        %v401 = vcvt.s32.f32 %v369
        %v402 = vcvt.s32.f32 %v370
        %v403 = vcvt.s32.f32 %v371
        %v404 = vcvt.s32.f32 %v372
        %v405 = vcvt.s32.f32 %v373
        %v406 = vcvt.s32.f32 %v374
        %v407 = vcvt.s32.f32 %v375
        %v408 = vcvt.s32.f32 %v376
        %v409 = vcvt.s32.f32 %v377
        %v410 = vcvt.s32.f32 %v378
        %v411 = vcvt.s32.f32 %v379
        %v412 = vcvt.s32.f32 %v380
        %v413 = vcvt.s32.f32 %v381
        %v414 = vcvt.s32.f32 %v382
        %v415 = vcvt.s32.f32 %v383
        %v416 = vcvt.s32.f32 %v384
        %v417 = vcvt.s32.f32 %v385
        %v418 = vcvt.s32.f32 %v386
        %v419 = vcvt.s32.f32 %v387
        %v420 = vcvt.s32.f32 %v388
        %v421 = vcvt.s32.f32 %v389
        %v422 = vcvt.s32.f32 %v390
        %v423 = vcvt.s32.f32 %v391
        %v424 = vcvt.s32.f32 %v392
        %v425 = vcvt.s32.f32 %v393
        %v426 = vcvt.s32.f32 %v394
        %v427 = vcvt.s32.f32 %v395
        %v428 = vcvt.s32.f32 %v396
        %v429 = vcvt.s32.f32 %v397
        %v430 = vcvt.s32.f32 %v398
        %v431 = vld [vmem:[%s2] sm:$0xff]
        %v432 = vld [vmem:[%s2 + $0x8] sm:$0xff]
        %v433 = vld [vmem:[%s2 + $0x10] sm:$0xff]
        %v434 = vld [vmem:[%s2 + $0x18] sm:$0xff]
        %v435 = vld [vmem:[%s2 + $0x20] sm:$0xff]
        %v436 = vld [vmem:[%s2 + $0x28] sm:$0xff]
        %v437 = vld [vmem:[%s2 + $0x30] sm:$0xff]
        %v438 = vld [vmem:[%s2 + $0x38] sm:$0xff]
        %v439 = vld [vmem:[%s2 + $0x40] sm:$0xff]
        %v440 = vld [vmem:[%s2 + $0x48] sm:$0xff]
        %v441 = vld [vmem:[%s2 + $0x50] sm:$0xff]
        %v442 = vld [vmem:[%s2 + $0x58] sm:$0xff]
        %v443 = vld [vmem:[%s2 + $0x60] sm:$0xff]
        %v444 = vld [vmem:[%s2 + $0x68] sm:$0xff]
        %v445 = vld [vmem:[%s2 + $0x70] sm:$0xff]
        %v446 = vld [vmem:[%s2 + $0x78] sm:$0xff]
        %v447 = vld [vmem:[%s2 + $0x80] sm:$0xff]
        %v448 = vld [vmem:[%s2 + $0x88] sm:$0xff]
        %v449 = vld [vmem:[%s2 + $0x90] sm:$0xff]
        %v450 = vld [vmem:[%s2 + $0x98] sm:$0xff]
        %v451 = vld [vmem:[%s2 + $0xa0] sm:$0xff]
        %v452 = vld [vmem:[%s2 + $0xa8] sm:$0xff]
        %v453 = vld [vmem:[%s2 + $0xb0] sm:$0xff]
        %v454 = vld [vmem:[%s2 + $0xb8] sm:$0xff]
        %v455 = vld [vmem:[%s2 + $0xc0] sm:$0xff]
        %v456 = vld [vmem:[%s2 + $0xc8] sm:$0xff]
        %v457 = vld [vmem:[%s2 + $0xd0] sm:$0xff]
        %v458 = vld [vmem:[%s2 + $0xd8] sm:$0xff]
        %v459 = vld [vmem:[%s2 + $0xe0] sm:$0xff]
        %v460 = vld [vmem:[%s2 + $0xe8] sm:$0xff]
        %v461 = vld [vmem:[%s2 + $0xf0] sm:$0xff]
        %v462 = vld [vmem:[%s2 + $0xf8] sm:$0xff]
        %s463 = sld [smem:[#allocation2]]
        %v464 = vmul.f32 %v399, %v401
        %v465 = vmul.f32 %v400, %v402
        %v466 = vmul.f32 %v401, %v403
        %v467 = vmul.f32 %v402, %v404
        %v468 = vmul.f32 %v403, %v405
        %v469 = vmul.f32 %v404, %v406
        %v470 = vmul.f32 %v405, %v407
        %v471 = vmul.f32 %v406, %v408
        %v472 = vmul.f32 %v407, %v409
        %v473 = vmul.f32 %v408, %v410
        %v474 = vmul.f32 %v409, %v411
        %v475 = vmul.f32 %v410, %v412
        %v476 = vmul.f32 %v411, %v413
        %v477 = vmul.f32 %v412, %v414
        %v478 = vmul.f32 %v413, %v415
        %v479 = vmul.f32 %v414, %v416
        %v480 = vmul.f32 %v415, %v417
        %v481 = vmul.f32 %v416, %v418
        %v482 = vmul.f32 %v417, %v419
        %v483 = vmul.f32 %v418, %v420
        %v484 = vmul.f32 %v419, %v421
        %v485 = vmul.f32 %v420, %v422
        %v486 = vmul.f32 %v421, %v423
        %v487 = vmul.f32 %v422, %v424
        %v488 = vmul.f32 %v423, %v425
        %v489 = vmul.f32 %v424, %v426
        %v490 = vmul.f32 %v425, %v427
        %v491 = vmul.f32 %v426, %v428
        %v492 = vmul.f32 %v427, %v429
        %v493 = vmul.f32 %v428, %v430
        %v494 = vadd.f32 %v464, %v466
        %v495 = vadd.f32 %v494, %v468
        %v496 = vadd.f32 %v495, %v470
        %v497 = vadd.f32 %v496, %v472
        %v498 = vadd.f32 %v497, %v474
        %v499 = vadd.f32 %v498, %v476
        %v500 = vadd.f32 %v499, %v478
        %v501 = vadd.f32 %v500, %v480
        %v502 = vadd.f32 %v501, %v482
        %v503 = vadd.f32 %v502, %v484
        %v504 = vadd.f32 %v503, %v486
        %v505 = vadd.f32 %v504, %v488
        %v506 = vadd.f32 %v505, %v490
        %v507 = vadd.f32 %v506, %v492
        %v508 = vadd.f32 %v465, %v467
        %v509 = vadd.f32 %v508, %v469
        %v510 = vadd.f32 %v509, %v471
        %v511 = vadd.f32 %v510, %v473
        %v512 = vadd.f32 %v511, %v475
        %v513 = vadd.f32 %v512, %v477
        %v514 = vadd.f32 %v513, %v479
        %v515 = vadd.f32 %v514, %v481
        %v516 = vadd.f32 %v515, %v483
        %v517 = vadd.f32 %v516, %v485
        %v518 = vadd.f32 %v517, %v487
        %v519 = vadd.f32 %v518, %v489
        %v520 = vadd.f32 %v519, %v491
        %v521 = vadd.f32 %v520, %v493
        %v522 = vadd.f32 %v507, %v521
        %v523 = vrot.slane %v522, 4
        %v524 = vadd.f32 %v522, %v523
        %v525 = vrot.slane %v524, 2
        %v526 = vadd.f32 %v524, %v525
        %v527 = vrot.slane %v526, 1
        %v528 = vadd.f32 %v526, %v527
        %v529 = vmul.f32 %v429, %v399
        %v530 = vmul.f32 %v430, %v400
        %v531 = vadd.f32 %v529, 0.0
        %v532 = vadd.f32 %v530, 0.0
        %v533 = vadd.f32 %v531, %v532
        %v534 = vrot.slane %v533, 4
        %v535 = vadd.f32 %v533, %v534
        %v536 = vrot.slane %v535, 2
        %v537 = vadd.f32 %v535, %v536
        %v538 = vrot.slane %v537, 1
        %v539 = vadd.f32 %v537, %v538
        %v540 = vadd.f32 %v528, %v539
        %vm573 = vcmask 1046528
        %v574 = vrot.slane %v399, 1
        %v575 = vrot.slane %v400, 1
        %v576 = vsel %vm573, %v574, %v575
        %v577 = vrot.slane %v401, 1
        %v578 = vrot.slane %v402, 1
        %v579 = vsel %vm573, %v577, %v578
        %v580 = vrot.slane %v403, 1
        %v581 = vrot.slane %v404, 1
        %v582 = vsel %vm573, %v580, %v581
        %v583 = vrot.slane %v405, 1
        %v584 = vrot.slane %v406, 1
        %v585 = vsel %vm573, %v583, %v584
        %v586 = vrot.slane %v407, 1
        %v587 = vrot.slane %v408, 1
        %v588 = vsel %vm573, %v586, %v587
        %v589 = vrot.slane %v409, 1
        %v590 = vrot.slane %v410, 1
        %v591 = vsel %vm573, %v589, %v590
        %v592 = vrot.slane %v411, 1
        %v593 = vrot.slane %v412, 1
        %v594 = vsel %vm573, %v592, %v593
        %v595 = vrot.slane %v413, 1
        %v596 = vrot.slane %v414, 1
        %v597 = vsel %vm573, %v595, %v596
        %v598 = vrot.slane %v415, 1
        %v599 = vrot.slane %v416, 1
        %v600 = vsel %vm573, %v598, %v599
        %v601 = vrot.slane %v417, 1
        %v602 = vrot.slane %v418, 1
        %v603 = vsel %vm573, %v601, %v602
        %v604 = vrot.slane %v419, 1
        %v605 = vrot.slane %v420, 1
        %v606 = vsel %vm573, %v604, %v605
        %v607 = vrot.slane %v421, 1
        %v608 = vrot.slane %v422, 1
        %v609 = vsel %vm573, %v607, %v608
        %v610 = vrot.slane %v423, 1
        %v611 = vrot.slane %v424, 1
        %v612 = vsel %vm573, %v610, %v611
        %v613 = vrot.slane %v425, 1
        %v614 = vrot.slane %v426, 1
        %v615 = vsel %vm573, %v613, %v614
        %v616 = vrot.slane %v427, 1
        %v617 = vrot.slane %v428, 1
        %v618 = vsel %vm573, %v616, %v617
        %v619 = vrot.slane %v429, 1
        %v620 = vrot.slane %v430, 1
        %v621 = vsel %vm573, %v619, %v620
        %v654 = vmul.f32 %v399, %v576
        %v655 = vmul.f32 %v400, %v575
        %v656 = vmul.f32 %v401, %v579
        %v657 = vmul.f32 %v402, %v578
        %v658 = vmul.f32 %v403, %v582
        %v659 = vmul.f32 %v404, %v581
        %v660 = vmul.f32 %v405, %v585
        %v661 = vmul.f32 %v406, %v584
        %v662 = vmul.f32 %v407, %v588
        %v663 = vmul.f32 %v408, %v587
        %v664 = vmul.f32 %v409, %v591
        %v665 = vmul.f32 %v410, %v590
        %v666 = vmul.f32 %v411, %v594
        %v667 = vmul.f32 %v412, %v593
        %v668 = vmul.f32 %v413, %v597
        %v669 = vmul.f32 %v414, %v596
        %v670 = vmul.f32 %v415, %v600
        %v671 = vmul.f32 %v416, %v599
        %v672 = vmul.f32 %v417, %v603
        %v673 = vmul.f32 %v418, %v602
        %v674 = vmul.f32 %v419, %v606
        %v675 = vmul.f32 %v420, %v605
        %v676 = vmul.f32 %v421, %v609
        %v677 = vmul.f32 %v422, %v608
        %v678 = vmul.f32 %v423, %v612
        %v679 = vmul.f32 %v424, %v611
        %v680 = vmul.f32 %v425, %v615
        %v681 = vmul.f32 %v426, %v614
        %v682 = vmul.f32 %v427, %v618
        %v683 = vmul.f32 %v428, %v617
        %v684 = vmul.f32 %v429, %v621
        %v685 = vmul.f32 %v430, %v620
        %v686 = vadd.f32 %v654, %v656
        %v687 = vadd.f32 %v686, %v658
        %v688 = vadd.f32 %v687, %v660
        %v689 = vadd.f32 %v688, %v662
        %v690 = vadd.f32 %v689, %v664
        %v691 = vadd.f32 %v690, %v666
        %v692 = vadd.f32 %v691, %v668
        %v693 = vadd.f32 %v692, %v670
        %v694 = vadd.f32 %v693, %v672
        %v695 = vadd.f32 %v694, %v674
        %v696 = vadd.f32 %v695, %v676
        %v697 = vadd.f32 %v696, %v678
        %v698 = vadd.f32 %v697, %v680
        %v699 = vadd.f32 %v698, %v682
        %v700 = vadd.f32 %v699, %v684
        %v701 = vsel %vm573, %v655, 0.0
        %v702 = vsel %vm573, %v657, 0.0
        %v703 = vadd.f32 %v701, %v702
        %v704 = vsel %vm573, %v659, 0.0
        %v705 = vadd.f32 %v703, %v704
        %v706 = vsel %vm573, %v661, 0.0
        %v707 = vadd.f32 %v705, %v706
        %v708 = vsel %vm573, %v663, 0.0
        %v709 = vadd.f32 %v707, %v708
        %v710 = vsel %vm573, %v665, 0.0
        %v711 = vadd.f32 %v709, %v710
        %v712 = vsel %vm573, %v667, 0.0
        %v713 = vadd.f32 %v711, %v712
        %v714 = vsel %vm573, %v669, 0.0
        %v715 = vadd.f32 %v713, %v714
        %v716 = vsel %vm573, %v671, 0.0
        %v717 = vadd.f32 %v715, %v716
        %v718 = vsel %vm573, %v673, 0.0
        %v719 = vadd.f32 %v717, %v718
        %v720 = vsel %vm573, %v675, 0.0
        %v721 = vadd.f32 %v719, %v720
        %v722 = vsel %vm573, %v677, 0.0
        %v723 = vadd.f32 %v721, %v722
        %v724 = vsel %vm573, %v679, 0.0
        %v725 = vadd.f32 %v723, %v724
        %v726 = vsel %vm573, %v681, 0.0
        %v727 = vadd.f32 %v725, %v726
        %v728 = vsel %vm573, %v683, 0.0
        %v729 = vadd.f32 %v727, %v728
        %v730 = vsel %vm573, %v685, 0.0
        %v731 = vadd.f32 %v729, %v730
        %v732 = vsel %vm573, %v731, 0.0
        %v733 = vadd.f32 %v700, %v732
        %v734 = vrot.slane %v733, 4
        %v735 = vadd.f32 %v733, %v734
        %v736 = vrot.slane %v735, 2
        %v737 = vadd.f32 %v735, %v736
        %v738 = vrot.slane %v737, 1
        %v739 = vadd.f32 %v737, %v738
        %v756 = vmul.f32 %v400, %v574
        %v757 = vmul.f32 %v402, %v577
        %v758 = vmul.f32 %v404, %v580
        %v759 = vmul.f32 %v406, %v583
        %v760 = vmul.f32 %v408, %v586
        %v761 = vmul.f32 %v410, %v589
        %v762 = vmul.f32 %v412, %v592
        %v763 = vmul.f32 %v414, %v595
        %v764 = vmul.f32 %v416, %v598
        %v765 = vmul.f32 %v418, %v601
        %v766 = vmul.f32 %v420, %v604
        %v767 = vmul.f32 %v422, %v607
        %v768 = vmul.f32 %v424, %v610
        %v769 = vmul.f32 %v426, %v613
        %v770 = vmul.f32 %v428, %v616
        %v771 = vmul.f32 %v430, %v619
        %vm772 = vcmask 1047559
        %v773 = vsel %vm772, %v756, 0.0
        %v774 = vsel %vm772, %v757, 0.0
        %v775 = vadd.f32 %v773, %v774
        %v776 = vsel %vm772, %v758, 0.0
        %v777 = vadd.f32 %v775, %v776
        %v778 = vsel %vm772, %v759, 0.0
        %v779 = vadd.f32 %v777, %v778
        %v780 = vsel %vm772, %v760, 0.0
        %v781 = vadd.f32 %v779, %v780
        %v782 = vsel %vm772, %v761, 0.0
        %v783 = vadd.f32 %v781, %v782
        %v784 = vsel %vm772, %v762, 0.0
        %v785 = vadd.f32 %v783, %v784
        %v786 = vsel %vm772, %v763, 0.0
        %v787 = vadd.f32 %v785, %v786
        %v788 = vsel %vm772, %v764, 0.0
        %v789 = vadd.f32 %v787, %v788
        %v790 = vsel %vm772, %v765, 0.0
        %v791 = vadd.f32 %v789, %v790
        %v792 = vsel %vm772, %v766, 0.0
        %v793 = vadd.f32 %v791, %v792
        %v794 = vsel %vm772, %v767, 0.0
        %v795 = vadd.f32 %v793, %v794
        %v796 = vsel %vm772, %v768, 0.0
        %v797 = vadd.f32 %v795, %v796
        %v798 = vsel %vm772, %v769, 0.0
        %v799 = vadd.f32 %v797, %v798
        %v800 = vsel %vm772, %v770, 0.0
        %v801 = vadd.f32 %v799, %v800
        %v802 = vsel %vm772, %v771, 0.0
        %v803 = vadd.f32 %v801, %v802
        %v804 = vadd.f32 %v803, 0.0
        %v805 = vadd.f32 %v739, %v804
        %v806 = vadd.f32 %v540, %v805
        %v807 = vmul.f32 %v806, -1.0
        %809 = vset.pattern.permute.xlu0 0
        %810 = vperm.xlu0 %809, %v431
        %v811 = vpop.permute.xlu0 %810
        %814 = vset.pattern.permute.xlu0 0
        %815 = vperm.xlu0 %814, %v432
        %v816 = vpop.permute.xlu0 %815
        %819 = vset.pattern.permute.xlu0 0
        %820 = vperm.xlu0 %819, %v433
        %v821 = vpop.permute.xlu0 %820
        %824 = vset.pattern.permute.xlu0 0
        %825 = vperm.xlu0 %824, %v434
        %v826 = vpop.permute.xlu0 %825
        %829 = vset.pattern.permute.xlu0 0
        %830 = vperm.xlu0 %829, %v435
        %v831 = vpop.permute.xlu0 %830
        %834 = vset.pattern.permute.xlu0 0
        %835 = vperm.xlu0 %834, %v436
        %v836 = vpop.permute.xlu0 %835
        %839 = vset.pattern.permute.xlu0 0
        %840 = vperm.xlu0 %839, %v437
        %v841 = vpop.permute.xlu0 %840
        %844 = vset.pattern.permute.xlu0 0
        %845 = vperm.xlu0 %844, %v438
        %v846 = vpop.permute.xlu0 %845
        %849 = vset.pattern.permute.xlu0 0
        %850 = vperm.xlu0 %849, %v439
        %v851 = vpop.permute.xlu0 %850
        %854 = vset.pattern.permute.xlu0 0
        %855 = vperm.xlu0 %854, %v440
        %v856 = vpop.permute.xlu0 %855
        %859 = vset.pattern.permute.xlu0 0
        %860 = vperm.xlu0 %859, %v441
        %v861 = vpop.permute.xlu0 %860
        %864 = vset.pattern.permute.xlu0 0
        %865 = vperm.xlu0 %864, %v442
        %v866 = vpop.permute.xlu0 %865
        %869 = vset.pattern.permute.xlu0 0
        %870 = vperm.xlu0 %869, %v443
        %v871 = vpop.permute.xlu0 %870
        %874 = vset.pattern.permute.xlu0 0
        %875 = vperm.xlu0 %874, %v444
        %v876 = vpop.permute.xlu0 %875
        %879 = vset.pattern.permute.xlu0 0
        %880 = vperm.xlu0 %879, %v445
        %v881 = vpop.permute.xlu0 %880
        %884 = vset.pattern.permute.xlu0 0
        %885 = vperm.xlu0 %884, %v446
        %v886 = vpop.permute.xlu0 %885
        %889 = vset.pattern.permute.xlu0 0
        %890 = vperm.xlu0 %889, %v447
        %v891 = vpop.permute.xlu0 %890
        %894 = vset.pattern.permute.xlu0 0
        %895 = vperm.xlu0 %894, %v448
        %v896 = vpop.permute.xlu0 %895
        %899 = vset.pattern.permute.xlu0 0
        %900 = vperm.xlu0 %899, %v449
        %v901 = vpop.permute.xlu0 %900
        %904 = vset.pattern.permute.xlu0 0
        %905 = vperm.xlu0 %904, %v450
        %v906 = vpop.permute.xlu0 %905
        %909 = vset.pattern.permute.xlu0 0
        %910 = vperm.xlu0 %909, %v451
        %v911 = vpop.permute.xlu0 %910
        %914 = vset.pattern.permute.xlu0 0
        %915 = vperm.xlu0 %914, %v452
        %v916 = vpop.permute.xlu0 %915
        %919 = vset.pattern.permute.xlu0 0
        %920 = vperm.xlu0 %919, %v453
        %v921 = vpop.permute.xlu0 %920
        %924 = vset.pattern.permute.xlu0 0
        %925 = vperm.xlu0 %924, %v454
        %v926 = vpop.permute.xlu0 %925
        %929 = vset.pattern.permute.xlu0 0
        %930 = vperm.xlu0 %929, %v455
        %v931 = vpop.permute.xlu0 %930
        %934 = vset.pattern.permute.xlu0 0
        %935 = vperm.xlu0 %934, %v456
        %v936 = vpop.permute.xlu0 %935
        %939 = vset.pattern.permute.xlu0 0
        %940 = vperm.xlu0 %939, %v457
        %v941 = vpop.permute.xlu0 %940
        %944 = vset.pattern.permute.xlu0 0
        %945 = vperm.xlu0 %944, %v458
        %v946 = vpop.permute.xlu0 %945
        %949 = vset.pattern.permute.xlu0 0
        %950 = vperm.xlu0 %949, %v459
        %v951 = vpop.permute.xlu0 %950
        %954 = vset.pattern.permute.xlu0 0
        %955 = vperm.xlu0 %954, %v460
        %v956 = vpop.permute.xlu0 %955
        %959 = vset.pattern.permute.xlu0 0
        %960 = vperm.xlu0 %959, %v461
        %v961 = vpop.permute.xlu0 %960
        %964 = vset.pattern.permute.xlu0 0
        %965 = vperm.xlu0 %964, %v462
        %v966 = vpop.permute.xlu0 %965
        %v968 = vmul.f32 %v811, %v399
        %v969 = vmul.f32 %v816, %v400
        %v970 = vmul.f32 %v821, %v401
        %v971 = vmul.f32 %v826, %v402
        %v972 = vmul.f32 %v831, %v403
        %v973 = vmul.f32 %v836, %v404
        %v974 = vmul.f32 %v841, %v405
        %v975 = vmul.f32 %v846, %v406
        %v976 = vmul.f32 %v851, %v407
        %v977 = vmul.f32 %v856, %v408
        %v978 = vmul.f32 %v861, %v409
        %v979 = vmul.f32 %v866, %v410
        %v980 = vmul.f32 %v871, %v411
        %v981 = vmul.f32 %v876, %v412
        %v982 = vmul.f32 %v881, %v413
        %v983 = vmul.f32 %v886, %v414
        %v984 = vmul.f32 %v891, %v415
        %v985 = vmul.f32 %v896, %v416
        %v986 = vmul.f32 %v901, %v417
        %v987 = vmul.f32 %v906, %v418
        %v988 = vmul.f32 %v911, %v419
        %v989 = vmul.f32 %v916, %v420
        %v990 = vmul.f32 %v921, %v421
        %v991 = vmul.f32 %v926, %v422
        %v992 = vmul.f32 %v931, %v423
        %v993 = vmul.f32 %v936, %v424
        %v994 = vmul.f32 %v941, %v425
        %v995 = vmul.f32 %v946, %v426
        %v996 = vmul.f32 %v951, %v427
        %v997 = vmul.f32 %v956, %v428
        %v998 = vmul.f32 %v961, %v429
        %v999 = vmul.f32 %v966, %v430
        %v1000 = vadd.f32 %v968, %v970
        %v1001 = vadd.f32 %v1000, %v972
        %v1002 = vadd.f32 %v1001, %v974
        %v1003 = vadd.f32 %v1002, %v976
        %v1004 = vadd.f32 %v1003, %v978
        %v1005 = vadd.f32 %v1004, %v980
        %v1006 = vadd.f32 %v1005, %v982
        %v1007 = vadd.f32 %v1006, %v984
        %v1008 = vadd.f32 %v1007, %v986
        %v1009 = vadd.f32 %v1008, %v988
        %v1010 = vadd.f32 %v1009, %v990
        %v1011 = vadd.f32 %v1010, %v992
        %v1012 = vadd.f32 %v1011, %v994
        %v1013 = vadd.f32 %v1012, %v996
        %v1014 = vadd.f32 %v1013, %v998
        %v1015 = vadd.f32 %v969, %v971
        %v1016 = vadd.f32 %v1015, %v973
        %v1017 = vadd.f32 %v1016, %v975
        %v1018 = vadd.f32 %v1017, %v977
        %v1019 = vadd.f32 %v1018, %v979
        %v1020 = vadd.f32 %v1019, %v981
        %v1021 = vadd.f32 %v1020, %v983
        %v1022 = vadd.f32 %v1021, %v985
        %v1023 = vadd.f32 %v1022, %v987
        %v1024 = vadd.f32 %v1023, %v989
        %v1025 = vadd.f32 %v1024, %v991
        %v1026 = vadd.f32 %v1025, %v993
        %v1027 = vadd.f32 %v1026, %v995
        %v1028 = vadd.f32 %v1027, %v997
        %v1029 = vadd.f32 %v1028, %v999
        %v1030 = vadd.f32 %v1014, %v1029
        %v1031 = vrot.slane %v1030, 4
        %v1032 = vadd.f32 %v1030, %v1031
        %v1033 = vrot.slane %v1032, 2
        %v1034 = vadd.f32 %v1032, %v1033
        %v1035 = vrot.slane %v1034, 1
        %v1036 = vadd.f32 %v1034, %v1035
        %v1037 = vmul.f32 %v1036, 0.5
        %v1038 = vstv %s463
        %v1039 = vsub.f32 %v1037, %v1038
        %v1040 = vmul.f32 %v807, 0.5
        %v1041 = vadd.f32 %v1039, %v1040
        %v1042 = vsub.f32 0.0, %v1040
        %v1043 = vsub.f32 %v1042, %v1039
        %v1045 = vrot.slane %v1041, 6
        %v1048 = vrot.slane %v1040, 5
        %v1051 = vrot.slane %v1043, 4
        %vm1053 = vcmask 1040384
        %v1054 = vsel %vm1053, %v1039, %v1045
        %vm1055 = vcmask 1041408
        %v1056 = vsel %vm1055, %v1054, %v1048
        %vm1057 = vcmask 1042432
        %v1058 = vsel %vm1057, %v1056, %v1051
        %1059 = vst [vmem:[%s334] sm:$0xf] %v1058
        %s1060 = sand.u32 %s94, 1
        %s1061 = scalar_lea.sflag [#allocation5], %s1060
        %s1062 = sand.u32 %s94, 1
        %s1063 = smul.addr %s1062, 4
        %s1064 = scalar_lea.vmem [#allocation4], %s1063
        // Predicated region
        $region74: #{tpu_custom_call.1} parent=68 // pred_check
          %p1065 = pneg %p104
        $region75: #{tpu_custom_call.1} parent=68 // pred_check_branch
          %1067 = sbr.rel (%p1065) target = $region77
        $region76: #{tpu_custom_call.1} parent=68 // pred_region
          %s1069 = ssub.s32 64, 64
          %1070 = vsyncadd %s1061, %s1069
          %s1071 = smul.addr %s18, 64
          %s1072 = scalar_lea.hbm %s3, %s1071
          %s1074 = sshll.u32 %s1064, 4
          %s1075 = int_to_ptr.vmem [resolvable:$true] %s1074
          %1077 = dma.vmem_to_hbm [thread:$0]  %s1075, 64, %s1072, %s1061
        $region77: #{tpu_custom_call.1} parent=68 // pred_fallthru
          _
      $region69: #{tpu_custom_call.1} parent=5 // pred_fallthru
        _
      %p1078 = scmp.le.s32.totalorder 2, %s13
      // Predicated region
      $region78: #{tpu_custom_call.1} parent=5 // pred_check
        %p1079 = pneg %p1078
      $region79: #{tpu_custom_call.1} parent=5 // pred_check_branch
        %1081 = sbr.rel (%p1079) target = $region81
      $region80: #{tpu_custom_call.1} parent=5 // pred_region
        %s1082 = ssub.s32 %s13, 2
        // Predicated region
        $region82: #{tpu_custom_call.1} parent=80 // pred_check
          %p1083 = pneg %p110
        $region83: #{tpu_custom_call.1} parent=80 // pred_check_branch
          %1085 = sbr.rel (%p1083) target = $region85
        $region84: #{tpu_custom_call.1} parent=80 // pred_region
          %s1086 = sand.u32 %s95, 1
          %s1087 = scalar_lea.sflag [#allocation5], %s1086
          %s1088 = sand.u32 %s95, 1
          %s1089 = smul.addr %s1088, 4
          %s1090 = scalar_lea.vmem [#allocation4], %s1089
          %1091 = dma.done %s1087, 64
        $region85: #{tpu_custom_call.1} parent=80 // pred_fallthru
          _
      $region81: #{tpu_custom_call.1} parent=5 // pred_fallthru
        _
    $region6: #{tpu_custom_call.1} parent=1 // loop_footer
      %s17 = sadd.s32 1, %s13
    $region7: #{tpu_custom_call.1} parent=1 // loop_footer_branch
      %12 = sbr.rel target = $region3
    $region8: #{tpu_custom_call.1} parent=1 // loop_exit
      _
    %1092 = vsyncpa [#allocation5], 1
    %s1093 = scalar_lea.sflag [#allocation5], 1
    %1094 = vsyncpa %s1093, 1

</llo_original>
